<compile_context>
chip_gen: v6e
topology: v6e:2x2x1
jax: 0.10.0
libtpu: 0.0.40
codegen_flags: <defaults>
</compile_context>

<pallas_src>
import jax
import jax.numpy as jnp
from jax.experimental import pallas as pl
from jax.experimental.pallas import tpu as pltpu


# ---------------------------------------------------------------------------
# Kernels
# ---------------------------------------------------------------------------
def _mlp_kernel_out_acc(x_ref, w_in_t_ref, w_out_t_ref, o_ref):
    """grid = (batch tiles, hidden tiles).  Hidden axis is a reduction axis.

    The f32 output tile itself is the accumulator (its block index is
    constant across the hidden axis, so it stays resident in VMEM).
    """
    h_step = pl.program_id(1)

    @pl.when(h_step == 0)
    def _init():
        o_ref[...] = jnp.zeros_like(o_ref)

    # Up-projection of this hidden slice (MXU) + ReLU (VPU).  ReLU is
    # elementwise over the hidden dim, so applying it per slice is exact.
    h = jnp.dot(x_ref[...], w_in_t_ref[...], preferred_element_type=jnp.float32)
    h = jnp.maximum(h, 0.0)

    # Partial down-projection for this hidden slice, f32 accumulate in-place.
    o_ref[...] += jnp.dot(h.astype(w_out_t_ref.dtype), w_out_t_ref[...],
                          preferred_element_type=jnp.float32)


def _mlp_kernel_scratch_acc(x_ref, w_in_t_ref, w_out_t_ref, o_ref, acc_ref):
    """Same reduction, but with an explicit f32 VMEM accumulator.

    Used when the output dtype is narrower than f32 (can't accumulate in it).
    """
    h_step = pl.program_id(1)

    @pl.when(h_step == 0)
    def _init():
        acc_ref[...] = jnp.zeros_like(acc_ref)

    h = jnp.dot(x_ref[...], w_in_t_ref[...], preferred_element_type=jnp.float32)
    h = jnp.maximum(h, 0.0)
    acc_ref[...] += jnp.dot(h.astype(w_out_t_ref.dtype), w_out_t_ref[...],
                            preferred_element_type=jnp.float32)

    @pl.when(h_step == pl.num_programs(1) - 1)
    def _finalize():
        o_ref[...] = acc_ref[...].astype(o_ref.dtype)


# ---------------------------------------------------------------------------
# Hardware / tiling heuristics
# ---------------------------------------------------------------------------
def _vmem_capacity_bytes() -> int:
    try:
        info = pltpu.get_tpu_info()
        cap = getattr(info, "vmem_capacity_bytes", None)
        if cap:
            return int(cap)
    except Exception:
        pass
    return 64 << 20  # conservative fallback (v7x per-TensorCore VMEM)


def _tpu_generation() -> str:
    kind = ""
    try:
        kind = jax.devices()[0].device_kind.lower()
    except Exception:
        pass
    if "v5" in kind:
        return "v5e"
    if "v6" in kind:
        return "v6e"
    if "v7" in kind:
        return "v7x"
    # Fall back on VMEM capacity: 64 MiB per core looks like v7x.
    return "v7x" if _vmem_capacity_bytes() <= (80 << 20) else "v6e"


def _round_up(x: int, m: int) -> int:
    return -(-x // m) * m


def _pick_block_b(B: int, gen: str) -> int:
    # Targets sized against each generation's compute/HBM ridge:
    #   v6e ridge ~650 FLOP/B -> ~1024 rows; v5e ~240 -> 512; v7x ~310 -> 512.
    target = {"v6e": 1024, "v5e": 512, "v7x": 512}.get(gen, 512)
    if B <= 16:
        return B  # tiny batch: full-dim block (always layout-legal)
    if B <= target:
        if gen == "v7x" and B >= 32:
            # Megacore: split into >= 2 batch tiles so both TCs get work.
            half = (B + 1) // 2
            return _round_up(half, 16)
        return B
    return target  # multiple of 16 (bf16 sublane packing)


def _pick_block_h(H: int, D: int, itemsize: int, vmem_cap: int, gen: str):
    """Returns (block_h, padded_H)."""
    # Per-tile weight budget: smaller on 64 MiB-VMEM chips (v7x).
    wt_budget = (4 << 20) if vmem_cap <= (80 << 20) else (8 << 20)
    if H <= 512 or D * H * itemsize <= wt_budget:
        return H, H  # single reduction step, no padding needed
    floor = 256 if gen == "v5e" else 512  # fill the 256-wide MXU, >=1 KiB rows
    max_th = max(floor, (wt_budget // max(1, D * itemsize)) // 128 * 128)
    H_pad = _round_up(H, 128)
    th = min(max_th, H_pad)
    th = max(128, (th // 128) * 128)
    while th > 128 and H_pad % th != 0:
        th -= 128
    return th, H_pad


# ---------------------------------------------------------------------------
# Entry points
# ---------------------------------------------------------------------------
def mlp_block_pretransposed(x, w_in_t, w_out_t, *,
                            block_b=None, block_h=None,
                            compute_dtype=jnp.bfloat16,
                            weight_buffer_count=None):
    """
    x:       [batch, model_dim]
    w_in_t:  [model_dim, hidden_dim]   (= W_in.T, pre-transposed at param init)
    w_out_t: [hidden_dim, model_dim]   (= W_out.T, pre-transposed at param init)
    returns  [batch, model_dim] in x's original dtype.
    """
    B, D = x.shape
    D2, H = w_in_t.shape
    assert D == D2 and w_out_t.shape == (H, D)

    out_dtype = x.dtype
    if compute_dtype is not None:
        x = x.astype(compute_dtype)
        w_in_t = w_in_t.astype(compute_dtype)
        w_out_t = w_out_t.astype(compute_dtype)
    itemsize = jnp.dtype(x.dtype).itemsize
    out_itemsize = jnp.dtype(out_dtype).itemsize
    use_out_acc = jnp.dtype(out_dtype) == jnp.dtype(jnp.float32)

    gen = _tpu_generation()
    vmem_cap = _vmem_capacity_bytes()
    vmem_budget = int(vmem_cap * 0.85)  # leave compiler/pipeline headroom

    if block_b is None:
        block_b = _pick_block_b(B, gen)
    if block_h is None:
        block_h, H_pad = _pick_block_h(H, D, itemsize, vmem_cap, gen)
    else:
        H_pad = _round_up(H, block_h) if H % block_h else H

    # Zero-pad the hidden dim so the reduction never reads a partial (garbage)
    # weight tile.  Zero hidden units are exact through ReLU + down-proj.
    if H_pad != H:
        w_in_t = jnp.pad(w_in_t, ((0, 0), (0, H_pad - H)))
        w_out_t = jnp.pad(w_out_t, ((0, H_pad - H), (0, 0)))

    num_h_steps = H_pad // block_h

    # Deeper weight buffering hides HBM latency on memory-bound small-batch
    # shapes on the slower-DMA generations.
    if weight_buffer_count is None:
        weight_buffer_count = 3 if (gen in ("v5e", "v6e") and B <= 256
                                    and num_h_steps >= 3) else 2
    n_wbuf = max(2, int(weight_buffer_count))

    def est(bb, bh):
        return (2 * bb * D * itemsize                  # x (double-buffered)
                + 2 * n_wbuf * bh * D * itemsize       # both weight tiles
                + 2 * bb * D * out_itemsize            # output tile
                + (0 if use_out_acc else bb * D * 4)   # f32 accumulator
                + bb * bh * (4 + itemsize))            # hidden intermediate

    # Shrink the batch tile if the live tile set would overflow VMEM (keeps
    # v7x's 64 MiB safe even for very large model_dim).
    while block_b > 64 and int(1.15 * est(block_b, block_h)) > vmem_budget:
        block_b = max(64, ((block_b // 2) // 16) * 16)

    grid = (-(-B // block_b), num_h_steps)
    vmem_limit = int(min(vmem_budget,
                         max(32 << 20, int(1.15 * est(block_b, block_h)))))

    num_batch_tiles = -(-B // block_b)
    cost = pl.CostEstimate(
        flops=4 * B * D * H_pad,  # two matmuls: 2*B*D*H each
        transcendentals=0,
        bytes_accessed=(B * D * itemsize
                        + num_batch_tiles * 2 * D * H_pad * itemsize  # re-stream
                        + B * D * out_itemsize))

    def _weight_spec(shape, index_map):
        if n_wbuf != 2:
            try:
                return pl.BlockSpec(shape, index_map,
                                    pipeline_mode=pl.Buffered(n_wbuf))
            except Exception:
                pass  # fall back to default double buffering
        return pl.BlockSpec(shape, index_map)

    in_specs = [
        # x tile: constant across the hidden axis -> fetched once per batch tile.
        pl.BlockSpec((block_b, D), lambda i, h: (i, 0)),
        # Streamed weight slices along the hidden (reduction) axis.
        _weight_spec((D, block_h), lambda i, h: (0, h)),
        _weight_spec((block_h, D), lambda i, h: (h, 0)),
    ]
    out_spec = pl.BlockSpec((block_b, D), lambda i, h: (i, 0))

    kernel = _mlp_kernel_out_acc if use_out_acc else _mlp_kernel_scratch_acc
    scratch = [] if use_out_acc else [pltpu.VMEM((block_b, D), jnp.float32)]

    return pl.pallas_call(
        kernel,
        out_shape=jax.ShapeDtypeStruct((B, D), out_dtype),
        grid_spec=pltpu.PrefetchScalarGridSpec(
            num_scalar_prefetch=0,
            grid=grid,
            in_specs=in_specs,
            out_specs=out_spec,
            scratch_shapes=scratch,
        ),
        compiler_params=pltpu.CompilerParams(
            dimension_semantics=("parallel", "arbitrary"),
            vmem_limit_bytes=vmem_limit),
        cost_estimate=cost,
    )(x, w_in_t, w_out_t)


def mlp_block(x, w_in, w_out, **kwargs):
    """
    Convenience wrapper taking PyTorch nn.Linear weight layouts:
      w_in:  [hidden_dim, model_dim]
      w_out: [model_dim, hidden_dim]
    In production, store the transposed weights once at parameter init and
    call mlp_block_pretransposed directly (avoids a per-call HBM rewrite).
    """
    return mlp_block_pretransposed(x, w_in.T, w_out.T, **kwargs)


if __name__ == "__main__":
    batch, model_dim, hidden_dim = 8, 32, 64

    key = jax.random.PRNGKey(0)
    kx, kwin, kwout = jax.random.split(key, 3)

    x = jax.random.normal(kx, (batch, model_dim), dtype=jnp.float32)
    # Deterministic synthetic parameters (PyTorch layouts: [out, in]).
    w_in = jax.random.normal(kwin, (hidden_dim, model_dim), dtype=jnp.float32) * 0.05
    w_out = jax.random.normal(kwout, (model_dim, hidden_dim), dtype=jnp.float32) * 0.05

    # Pure-JAX reference of the PyTorch forward.
    ref = jnp.maximum(x @ w_in.T, 0.0) @ w_out.T

    # Default path: bf16 operands (fast MXU / half weight bytes), f32 accumulate.
    out = jax.block_until_ready(mlp_block(x, w_in, w_out))
    assert out.shape == (batch, model_dim)
    assert out.dtype == x.dtype
    assert jnp.allclose(out, ref, atol=2e-2, rtol=2e-2)

    # Full-f32 operand path (tight tolerance).
    out_f32 = jax.block_until_ready(
        mlp_block(x, w_in, w_out, compute_dtype=jnp.float32))
    assert jnp.allclose(out_f32, ref, atol=1e-5, rtol=1e-5)

    print("KERNEL_OK")
</pallas_src>

<mosaic_0001>
module attributes {stable_mosaic.version = 11 : i64} {
  func.func @_mlp_kernel_out_acc(%arg0: i32, %arg1: i32, %arg2: memref<8x32xbf16, #tpu.memory_space<vmem>>, %arg3: memref<32x64xbf16, #tpu.memory_space<vmem>>, %arg4: memref<64x32xbf16, #tpu.memory_space<vmem>>, %arg5: memref<8x32xf32, #tpu.memory_space<vmem>>) attributes {dimension_semantics = [#tpu.dimension_semantics<parallel>, #tpu.dimension_semantics<arbitrary>], iteration_bounds = array<i64: 1, 1>, scalar_prefetch = 0 : i64, scratch_operands = 0 : i64, tpu.core_type = #tpu.core_type<tc>, window_params = [{transform_indices = @transform_0, window_bounds = array<i64: 8, 32>}, {transform_indices = @transform_1, window_bounds = array<i64: 32, 64>}, {transform_indices = @transform_2, window_bounds = array<i64: 64, 32>}, {transform_indices = @transform_3, window_bounds = array<i64: 8, 32>}]} {
    %c0_i32 = arith.constant 0 : i32
    %0 = arith.cmpi eq, %arg1, %c0_i32 : i32
    %1 = arith.extui %0 : i1 to i32
    %c0_i32_0 = arith.constant 0 : i32
    %2 = arith.cmpi ne, %1, %c0_i32_0 : i32
    scf.if %2 {
      %cst_12 = arith.constant 0.000000e+00 : f32
      %14 = vector.broadcast %cst_12 : f32 to vector<8x32xf32>
      %c0_13 = arith.constant 0 : index
      %c0_14 = arith.constant 0 : index
      %15 = vector.load %arg5[%c0_13, %c0_14] : memref<8x32xf32, #tpu.memory_space<vmem>>, vector<8x32xf32>
      tpu.vector_store %arg5[%c0_13, %c0_14], %14 {strides = array<i32>} : memref<8x32xf32, #tpu.memory_space<vmem>>, vector<8x32xf32>,
    } else {
    }
    %c0 = arith.constant 0 : index
    %c0_1 = arith.constant 0 : index
    %3 = vector.load %arg2[%c0, %c0_1] : memref<8x32xbf16, #tpu.memory_space<vmem>>, vector<8x32xbf16>
    %c0_2 = arith.constant 0 : index
    %c0_3 = arith.constant 0 : index
    %4 = vector.load %arg3[%c0_2, %c0_3] : memref<32x64xbf16, #tpu.memory_space<vmem>>, vector<32x64xbf16>
    %cst = arith.constant dense<0.000000e+00> : vector<8x64xf32>
    %5 = tpu.matmul %3, %4, %cst {dimension_numbers = #tpu.dot_dimension_numbers<[1], [0], [0], [1], [0, 0, 1, 1], [], []>} : vector<8x32xbf16>, vector<32x64xbf16>, vector<8x64xf32> -> vector<8x64xf32>
    %cst_4 = arith.constant 0.000000e+00 : f32
    %6 = vector.broadcast %cst_4 : f32 to vector<8x64xf32>
    %7 = arith.maximumf %5, %6 : vector<8x64xf32>
    %c0_5 = arith.constant 0 : index
    %c0_6 = arith.constant 0 : index
    %8 = vector.load %arg5[%c0_5, %c0_6] : memref<8x32xf32, #tpu.memory_space<vmem>>, vector<8x32xf32>
    %9 = arith.truncf %7 : vector<8x64xf32> to vector<8x64xbf16>
    %c0_7 = arith.constant 0 : index
    %c0_8 = arith.constant 0 : index
    %10 = vector.load %arg4[%c0_7, %c0_8] : memref<64x32xbf16, #tpu.memory_space<vmem>>, vector<64x32xbf16>
    %cst_9 = arith.constant dense<0.000000e+00> : vector<8x32xf32>
    %11 = tpu.matmul %9, %10, %cst_9 {dimension_numbers = #tpu.dot_dimension_numbers<[1], [0], [0], [1], [0, 0, 1, 1], [], []>} : vector<8x64xbf16>, vector<64x32xbf16>, vector<8x32xf32> -> vector<8x32xf32>
    %12 = arith.addf %8, %11 : vector<8x32xf32>
    %c0_10 = arith.constant 0 : index
    %c0_11 = arith.constant 0 : index
    %13 = vector.load %arg5[%c0_10, %c0_11] : memref<8x32xf32, #tpu.memory_space<vmem>>, vector<8x32xf32>
    tpu.vector_store %arg5[%c0_10, %c0_11], %12 {strides = array<i32>} : memref<8x32xf32, #tpu.memory_space<vmem>>, vector<8x32xf32>,
    return
  }
  func.func @transform_0(%arg0: i32, %arg1: i32) -> (i32, i32) {
    %c0_i32 = arith.constant 0 : i32
    %c0_i32_0 = arith.constant 0 : i32
    return %arg0, %c0_i32 : i32, i32
  }
  func.func @transform_1(%arg0: i32, %arg1: i32) -> (i32, i32) {
    %c0_i32 = arith.constant 0 : i32
    %c0_i32_0 = arith.constant 0 : i32
    return %c0_i32, %arg1 : i32, i32
  }
  func.func @transform_2(%arg0: i32, %arg1: i32) -> (i32, i32) {
    %c0_i32 = arith.constant 0 : i32
    %c0_i32_0 = arith.constant 0 : i32
    return %arg1, %c0_i32 : i32, i32
  }
  func.func @transform_3(%arg0: i32, %arg1: i32) -> (i32, i32) {
    %c0_i32 = arith.constant 0 : i32
    %c0_i32_0 = arith.constant 0 : i32
    return %arg0, %c0_i32 : i32, i32
  }
}

</mosaic_0001>

<llo_original>
// kernel: tpu_custom_call.1
$region0: #{tpu_custom_call.1}
  #allocation0 [shape = 'u32[]', space=smem, size = 0x4, offset = 0x4, fixed_abs, tag = 'smem constant byte address 0x4 - core index']
  #allocation1 [shape = 'u32[144,128]{1,0:T(1,128)}', space=vmem, size = 0x12000, scoped, tag = 'internal scratch']
  %s0 = inlined_call_operand.vmem [shape: bf16[8,32], index: 0, kind: input, shape index: {}]
  %s1 = inlined_call_operand.vmem [shape: bf16[32,64], index: 1, kind: input, shape index: {}]
  %s2 = inlined_call_operand.vmem [shape: bf16[64,32], index: 2, kind: input, shape index: {}]
  %s3 = inlined_call_operand.hbm [shape: f32[8,32], index: 3, kind: output, shape index: {}]
  %s4 = sld [smem:[#allocation0]]
  $region26: #{tpu_custom_call.1} parent=0
    _
  %s6 = ssub.s32 1, %s4
  %s7 = scalar_select 0, %s6, %s4
  $region1: #{tpu_custom_call.1} parent=0
    #allocation2 [shape = 'u8[4096]{0}', space=vmem, size = 0x1000, scoped, tag = 'output window, operand 0, single buffered']
    #allocation3 [shape = 's32[1]{0}', space=sflag, size = 0x4, scoped, tag = 'scoped memory for tpu_custom_call.1']
    %8 = vsyncpa [#allocation3], 0
    // Predicated region
    $region2: #{tpu_custom_call.1} parent=1 // pred_check
      _
    $region3: #{tpu_custom_call.1} parent=1 // pred_check_branch
      %10 = sbr.rel (0) target = $region5
    $region4: #{tpu_custom_call.1} parent=1 // pred_region
      _
    $region5: #{tpu_custom_call.1} parent=1 // pred_fallthru
      _
    // Predicated region
    $region6: #{tpu_custom_call.1} parent=1 // pred_check
      _
    $region7: #{tpu_custom_call.1} parent=1 // pred_check_branch
      %12 = sbr.rel (0) target = $region9
    $region8: #{tpu_custom_call.1} parent=1 // pred_region
      _
    $region9: #{tpu_custom_call.1} parent=1 // pred_fallthru
      _
    // Predicated region
    $region10: #{tpu_custom_call.1} parent=1 // pred_check
      _
    $region11: #{tpu_custom_call.1} parent=1 // pred_check_branch
      %14 = sbr.rel (0) target = $region13
    $region12: #{tpu_custom_call.1} parent=1 // pred_region
      _
    $region13: #{tpu_custom_call.1} parent=1 // pred_fallthru
      _
    %p16 = scmp.eq.s32.totalorder 0, 0
    // Predicated region
    $region14: #{tpu_custom_call.1} parent=1 // pred_check
      %p17 = pneg %p16
    $region15: #{tpu_custom_call.1} parent=1 // pred_check_branch
      %19 = sbr.rel (%p17) target = $region17
    $region16: #{tpu_custom_call.1} parent=1 // pred_region
      %vm20 = vcmask 261120
      %21 = vst.msk [vmem:[#allocation2] sm:$0xff] %vm20, 0.0
    $region17: #{tpu_custom_call.1} parent=1 // pred_fallthru
      _
    %v22 = vld [vmem:[%s0] sm:$0xf]
    %v23 = vld [vmem:[%s1] sm:$0xf]
    %v24 = vld [vmem:[%s1 + $0x4] sm:$0xf]
    %v25 = vld [vmem:[%s1 + $0x8] sm:$0xf]
    %v26 = vld [vmem:[%s1 + $0xc] sm:$0xf]
    %v31 = vunpack.c.l.b16 %v23
    %v32 = vunpack.c.l.b16 %v24
    %v33 = vunpack.c.l.b16 %v25
    %v34 = vunpack.c.l.b16 %v26
    %v35 = vpack.c.b16 %v32, %v31
    %v36 = vpack.c.b16 %v34, %v33
    %vm39 = vcmask 261120
    %v41 = vsel %vm39, %v22, 0
    %43 = vmatprep.subr.bf16.mxu0 0
    %44 = vmatpush1.bf16.msra.mxu0 0
    %45 = vmatprep.subr.bf16.mxu0 0
    %46 = vmatpush1.bf16.msra.mxu0 0
    %47 = vmatprep.subr.bf16.mxu0 0
    %48 = vmatpush1.bf16.msra.mxu0 0
    %49 = vmatprep.subr.bf16.mxu0 0
    %50 = vmatpush1.bf16.msra.mxu0 0
    %51 = vmatprep.subr.bf16.mxu0 0
    %52 = vmatpush1.bf16.msra.mxu0 0
    %53 = vmatprep.subr.bf16.mxu0 0
    %54 = vmatpush1.bf16.msra.mxu0 0
    %55 = vmatprep.subr.bf16.mxu0 0
    %56 = vmatpush1.bf16.msra.mxu0 %v36
    %57 = vmatprep.subr.bf16.mxu0 0
    %58 = vmatpush1.bf16.msra.mxu0 %v35
    %59 = vmatprep.subr.bf16.mxu0 0
    %60 = vmatpush2.bf16.msra.mxu0 0
    %61 = vmatprep.subr.bf16.mxu0 0
    %62 = vmatpush2.bf16.msra.mxu0 0
    %63 = vmatprep.subr.bf16.mxu0 0
    %64 = vmatpush2.bf16.msra.mxu0 0
    %65 = vmatprep.subr.bf16.mxu0 0
    %66 = vmatpush2.bf16.msra.mxu0 0
    %67 = vmatprep.subr.bf16.mxu0 0
    %68 = vmatpush2.bf16.msra.mxu0 0
    %69 = vmatprep.subr.bf16.mxu0 0
    %70 = vmatpush2.bf16.msra.mxu0 0
    %71 = vmatprep.subr.bf16.mxu0 0
    %72 = vmatpush2.bf16.msra.mxu0 0
    %73 = vmatprep.subr.bf16.mxu0 0
    %74 = vmatpush2.bf16.msra.mxu0 0
    %75 = vmatprep.mubr.bf16.mxu0 0
    %76 = vmatmul.mubr.bf16.gmra.mxu0 %v41
    %v77 = vpop.f32.mrf.mxu0
    %v78 = vadd.f32 0.0, %v77
    %v79 = vpop.f32.mrf.mxu0
    %v80 = vpop.f32.mrf.mxu0
    %v81 = vpop.f32.mrf.mxu0
    %82 = vdwg.mxu0
    %v83 = vmax.f32 %v78, 0.0
    %v84 = vld [vmem:[#allocation2] sm:$0xff]
    %v85 = vpack.c.bf16 %v83, %v83
    %v86 = vld [vmem:[%s2] sm:$0xf]
    %v87 = vld [vmem:[%s2 + $0x4] sm:$0xf]
    %v88 = vld [vmem:[%s2 + $0x8] sm:$0xf]
    %v89 = vld [vmem:[%s2 + $0xc] sm:$0xf]
    %v90 = vld [vmem:[%s2 + $0x10] sm:$0xf]
    %v91 = vld [vmem:[%s2 + $0x14] sm:$0xf]
    %v92 = vld [vmem:[%s2 + $0x18] sm:$0xf]
    %v93 = vld [vmem:[%s2 + $0x1c] sm:$0xf]
    %v102 = vunpack.c.l.b16 %v86
    %v103 = vunpack.c.l.b16 %v87
    %v104 = vunpack.c.l.b16 %v88
    %v105 = vunpack.c.l.b16 %v89
    %v106 = vunpack.c.l.b16 %v90
    %v107 = vunpack.c.l.b16 %v91
    %v108 = vunpack.c.l.b16 %v92
    %v109 = vunpack.c.l.b16 %v93
    %v110 = vpack.c.b16 %v103, %v102
    %v111 = vpack.c.b16 %v105, %v104
    %v112 = vpack.c.b16 %v107, %v106
    %v113 = vpack.c.b16 %v109, %v108
    %vm118 = vcmask 523264
    %v120 = vsel %vm118, %v85, 0
    %122 = vmatprep.subr.bf16.mxu0 0
    %123 = vmatpush1.bf16.msra.mxu0 0
    %124 = vmatprep.subr.bf16.mxu0 0
    %125 = vmatpush1.bf16.msra.mxu0 0
    %126 = vmatprep.subr.bf16.mxu0 0
    %127 = vmatpush1.bf16.msra.mxu0 0
    %128 = vmatprep.subr.bf16.mxu0 0
    %129 = vmatpush1.bf16.msra.mxu0 0
    %130 = vmatprep.subr.bf16.mxu0 0
    %131 = vmatpush1.bf16.msra.mxu0 %v113
    %132 = vmatprep.subr.bf16.mxu0 0
    %133 = vmatpush1.bf16.msra.mxu0 %v112
    %134 = vmatprep.subr.bf16.mxu0 0
    %135 = vmatpush1.bf16.msra.mxu0 %v111
    %136 = vmatprep.subr.bf16.mxu0 0
    %137 = vmatpush1.bf16.msra.mxu0 %v110
    %138 = vmatprep.subr.bf16.mxu0 0
    %139 = vmatpush2.bf16.msra.mxu0 0
    %140 = vmatprep.subr.bf16.mxu0 0
    %141 = vmatpush2.bf16.msra.mxu0 0
    %142 = vmatprep.subr.bf16.mxu0 0
    %143 = vmatpush2.bf16.msra.mxu0 0
    %144 = vmatprep.subr.bf16.mxu0 0
    %145 = vmatpush2.bf16.msra.mxu0 0
    %146 = vmatprep.subr.bf16.mxu0 0
    %147 = vmatpush2.bf16.msra.mxu0 0
    %148 = vmatprep.subr.bf16.mxu0 0
    %149 = vmatpush2.bf16.msra.mxu0 0
    %150 = vmatprep.subr.bf16.mxu0 0
    %151 = vmatpush2.bf16.msra.mxu0 0
    %152 = vmatprep.subr.bf16.mxu0 0
    %153 = vmatpush2.bf16.msra.mxu0 0
    %154 = vmatprep.mubr.bf16.mxu0 0
    %155 = vmatmul.mubr.bf16.gmra.mxu0 %v120
    %v156 = vpop.f32.mrf.mxu0
    %v157 = vadd.f32 0.0, %v156
    %v158 = vpop.f32.mrf.mxu0
    %v159 = vpop.f32.mrf.mxu0
    %v160 = vpop.f32.mrf.mxu0
    %161 = vdwg.mxu0
    %v162 = vadd.f32 %v84, %v157
    %163 = vst.msk [vmem:[#allocation2] sm:$0xff] %vm39, %v162
    // Predicated region
    $region18: #{tpu_custom_call.1} parent=1 // pred_check
      _
    $region19: #{tpu_custom_call.1} parent=1 // pred_check_branch
      %165 = sbr.rel (0) target = $region21
    $region20: #{tpu_custom_call.1} parent=1 // pred_region
      %s167 = ssub.s32 128, 128
      %168 = vsyncadd [#allocation3], %s167
      %s170 = sshll.u32 [#allocation2], 4
      %s171 = int_to_ptr.vmem [resolvable:$true] %s170
      %173 = dma.vmem_to_hbm [thread:$0]  %s171, 128, %s3, [#allocation3]
    $region21: #{tpu_custom_call.1} parent=1 // pred_fallthru
      _
    // Predicated region
    $region22: #{tpu_custom_call.1} parent=1 // pred_check
      _
    $region23: #{tpu_custom_call.1} parent=1 // pred_check_branch
      %175 = sbr.rel (0) target = $region25
    $region24: #{tpu_custom_call.1} parent=1 // pred_region
      %176 = dma.done [#allocation3], 128
    $region25: #{tpu_custom_call.1} parent=1 // pred_fallthru
      _
    %177 = vsyncpa [#allocation3], 1

</llo_original>
